<compile_context>
chip_gen: v5e
topology: v5e:2x2
jax: 0.10.0
libtpu: 0.0.40
codegen_flags: <defaults>
</compile_context>

<pallas_src>
import functools

import jax
import jax.numpy as jnp
import numpy as np
from jax.experimental import pallas as pl
from jax.experimental.pallas import tpu as pltpu

K = 7                                   # unified spatial kernel size (1/3/5/7 embedded, centered)
CENTER = (K // 2) * K + (K // 2)        # patch-row index of the un-shifted (raw) pixel


def conv_svm_kernel(scal_ref, p_ref, w_ref, zb_ref, o_ref, *, nc):
    """One lane tile (TM flattened pixels of the whole batch) per grid step.

    scal_ref: SMEM (3 + nc,) f32  -> [-1/rbf_scale^2, svm_scale, svm_bias,
                                      rbf_bias for the raw-input channels]
    p_ref:    VMEM (K*K*nc, TM)   transposed im2col patches, row = (dh*K+dw)*nc + c
    w_ref:    VMEM (nf4, K*K*nc)  fused conv weights (transposed)
    zb_ref:   VMEM (nf4, 1)       conv_bias + rbf_bias[:nf4]
    o_ref:    VMEM (1, TM)        sigmoid(SVM) output (lane-dense row)
    """
    nf4 = w_ref.shape[0]

    # Fused 7x7 conv1357 as a single MXU matmul, f32 accumulate.
    conv = jnp.dot(w_ref[...], p_ref[...],
                   precision=jax.lax.Precision.HIGHEST,
                   preferred_element_type=jnp.float32)            # (nf4, TM)
    z = conv + zb_ref[...]                                        # + conv_bias + rbf_bias

    # Channel-wise sum of squares via a ones-row matmul -> lane-dense (1, TM).
    ones_row = jnp.ones((1, nf4), jnp.float32)
    ssum = jnp.dot(ones_row, z * z,
                   precision=jax.lax.Precision.HIGHEST,
                   preferred_element_type=jnp.float32)            # (1, TM)

    # Raw-input channels of the RBF: the un-shifted pixel is already a patch row.
    for c in range(nc):
        row = CENTER * nc + c
        xc = p_ref[row:row + 1, :]                                # (1, TM)
        ssum = ssum + (xc + scal_ref[3 + c]) ** 2

    rbf = jnp.exp(ssum * scal_ref[0])                             # scal[0] = -1/rbf_scale^2
    svm = rbf * scal_ref[1] + scal_ref[2]
    o_ref[...] = jax.nn.sigmoid(svm)                              # (1, TM)


def _choose_tile(m_total):
    """Largest lane-dense tile (multiple of 128) dividing the flattened axis,
    preferring >= 2 grid blocks so both v7x TensorCores get work."""
    for want_two in (True, False):
        for tm in (2048, 1024, 512, 256, 128):
            if m_total % tm == 0 and (m_total // tm >= 2 or not want_two):
                return tm
    return m_total  # odd sizes: single full-extent block (still legal)


@jax.jit
def conv_svm_forward(x_nchw, w7, conv_bias, rbf_bias, rbf_scale, svm_scale, svm_bias):
    x = jnp.transpose(x_nchw, (0, 2, 3, 1)).astype(jnp.float32)   # NHWC
    N, H, W, nc = x.shape
    nf4 = w7.shape[-1]
    M = N * H * W

    # Transposed im2col: row r = (dh*K+dw)*nc + c, column = flattened (n, h, w).
    xpad = jnp.pad(x, ((0, 0), (3, 3), (3, 3), (0, 0)))
    cols = [xpad[:, dh:dh + H, dw:dw + W, :] for dh in range(K) for dw in range(K)]
    patches = jnp.concatenate(cols, axis=-1).reshape(M, K * K * nc).T     # (KKnc, M)

    w_t = w7.reshape(K * K * nc, nf4).T.astype(jnp.float32)               # (nf4, KKnc)
    zb = (conv_bias + rbf_bias[:nf4]).astype(jnp.float32)[:, None]        # (nf4, 1)
    scal = jnp.concatenate([
        jnp.stack([-1.0 / (rbf_scale * rbf_scale), svm_scale, svm_bias]),
        rbf_bias[nf4:nf4 + nc],
    ]).astype(jnp.float32)                                                # (3 + nc,)

    tm = _choose_tile(M)
    grid = (M // tm,)

    out = pl.pallas_call(
        functools.partial(conv_svm_kernel, nc=nc),
        out_shape=jax.ShapeDtypeStruct((1, M), jnp.float32),
        grid_spec=pltpu.PrefetchScalarGridSpec(
            num_scalar_prefetch=0,
            grid=grid,
            in_specs=[
                pl.BlockSpec(memory_space=pltpu.MemorySpace.SMEM),        # scalars
                pl.BlockSpec((K * K * nc, tm), lambda i: (0, i)),         # patches
                pl.BlockSpec(memory_space=pltpu.MemorySpace.VMEM),        # fused weights
                pl.BlockSpec(memory_space=pltpu.MemorySpace.VMEM),        # fused bias
            ],
            out_specs=pl.BlockSpec((1, tm), lambda i: (0, i)),
        ),
        compiler_params=pltpu.CompilerParams(dimension_semantics=("parallel",)),
    )(scal, patches, w_t, zb)

    return out.reshape(N, H, W)[:, None, :, :]                            # NCHW (N,1,H,W)


def ref_forward(x_nchw, w7, conv_bias, rbf_bias, rbf_scale, svm_scale, svm_bias):
    """Pure-JAX reference (same math, via lax.conv)."""
    x = jnp.transpose(x_nchw, (0, 2, 3, 1)).astype(jnp.float32)
    conv = jax.lax.conv_general_dilated(
        x, w7, (1, 1), ((3, 3), (3, 3)),
        dimension_numbers=("NHWC", "HWIO", "NHWC"),
        precision=jax.lax.Precision.HIGHEST) + conv_bias
    feat = jnp.concatenate([conv, x], axis=-1)
    ssum = jnp.sum((feat + rbf_bias) ** 2, axis=-1, keepdims=True)
    rbf = jnp.exp(-ssum / rbf_scale ** 2)
    svm = rbf * svm_scale + svm_bias
    return jnp.transpose(jax.nn.sigmoid(svm), (0, 3, 1, 2))


def init_params(key, nf, nc):
    """Deterministic synthetic parameters (shapes follow the PyTorch __init__)."""
    ks = jax.random.split(key, 8)
    sizes = (1, 3, 5, 7)
    w7 = jnp.zeros((K, K, nc, 4 * nf), jnp.float32)                       # HWIO
    for i, k in enumerate(sizes):
        wk = 0.1 * jax.random.normal(ks[i], (k, k, nc, nf), jnp.float32)
        off = (K - k) // 2
        w7 = w7.at[off:off + k, off:off + k, :, i * nf:(i + 1) * nf].set(wk)
    conv_bias = 0.1 * jax.random.normal(ks[4], (4 * nf,), jnp.float32)
    rbf_bias = jax.random.normal(ks[5], (4 * nf + nc,), jnp.float32)      # RBF_bias (nc_feat,)
    svm_scale = jax.random.normal(ks[6], (), jnp.float32)                 # SVM_scale (1,)
    svm_bias = jax.random.normal(ks[7], (), jnp.float32)                  # SVM_bias (1,)
    rbf_scale = 1.0 + jnp.abs(jax.random.normal(jax.random.fold_in(key, 99), (), jnp.float32))
    return w7, conv_bias, rbf_bias, rbf_scale, svm_scale, svm_bias


if __name__ == "__main__":
    # Small shapes: batch=2, nc=1 input channel (module default), 16x16 spatial,
    # nf=8 -> 33 SVM channels.
    N, nc, H, W, nf = 2, 1, 16, 16, 8
    key = jax.random.PRNGKey(0)
    kx, kp = jax.random.split(key)
    x = jax.random.normal(kx, (N, nc, H, W), jnp.float32)
    params = init_params(kp, nf, nc)

    out = conv_svm_forward(x, *params)
    out = jax.block_until_ready(out)

    ref = ref_forward(x, *params)
    assert out.shape == (N, 1, H, W), out.shape
    np.testing.assert_allclose(np.asarray(out), np.asarray(ref), atol=1e-4, rtol=1e-4)
    print("KERNEL_OK")
</pallas_src>

<mosaic_0001>
module attributes {stable_mosaic.version = 11 : i64} {
  func.func @conv_svm_kernel(%arg0: i32, %arg1: memref<4xf32, #tpu.memory_space<smem>>, %arg2: memref<49x256xf32, #tpu.memory_space<vmem>>, %arg3: memref<32x49xf32, #tpu.memory_space<vmem>>, %arg4: memref<32x1xf32, #tpu.memory_space<vmem>>, %arg5: memref<1x256xf32, #tpu.memory_space<vmem>>) attributes {dimension_semantics = [#tpu.dimension_semantics<parallel>], iteration_bounds = array<i64: 2>, scalar_prefetch = 0 : i64, scratch_operands = 0 : i64, tpu.core_type = #tpu.core_type<tc>, window_params = [{transform_indices = @transform_0, window_bounds = array<i64: 4>}, {transform_indices = @transform_1, window_bounds = array<i64: 49, 256>}, {pipeline_mode = #tpu.pipeline_mode<synchronous>, transform_indices = @transform_2, window_bounds = array<i64: 32, 49>}, {pipeline_mode = #tpu.pipeline_mode<synchronous>, transform_indices = @transform_3, window_bounds = array<i64: 32, 1>}, {transform_indices = @transform_4, window_bounds = array<i64: 1, 256>}]} {
    %c0 = arith.constant 0 : index
    %c0_0 = arith.constant 0 : index
    %0 = vector.load %arg3[%c0, %c0_0] : memref<32x49xf32, #tpu.memory_space<vmem>>, vector<32x49xf32>
    %c0_1 = arith.constant 0 : index
    %c0_2 = arith.constant 0 : index
    %1 = vector.load %arg2[%c0_1, %c0_2] : memref<49x256xf32, #tpu.memory_space<vmem>>, vector<49x256xf32>
    %cst = arith.constant dense<0.000000e+00> : vector<32x256xf32>
    %2 = tpu.matmul %0, %1, %cst {dimension_numbers = #tpu.dot_dimension_numbers<[1], [0], [0], [1], [0, 0, 1, 1], [], []>, precision = #tpu.contract_precision<fp32>} : vector<32x49xf32>, vector<49x256xf32>, vector<32x256xf32> -> vector<32x256xf32>
    %c0_3 = arith.constant 0 : index
    %c0_4 = arith.constant 0 : index
    %3 = vector.load %arg4[%c0_3, %c0_4] : memref<32x1xf32, #tpu.memory_space<vmem>>, vector<32x1xf32>
    %4 = vector.broadcast %3 : vector<32x1xf32> to vector<32x256xf32>
    %5 = arith.addf %2, %4 : vector<32x256xf32>
    %cst_5 = arith.constant 1.000000e+00 : f32
    %6 = vector.broadcast %cst_5 : f32 to vector<1x32xf32>
    %7 = arith.mulf %5, %5 : vector<32x256xf32>
    %cst_6 = arith.constant dense<0.000000e+00> : vector<1x256xf32>
    %8 = tpu.matmul %6, %7, %cst_6 {dimension_numbers = #tpu.dot_dimension_numbers<[1], [0], [0], [1], [0, 0, 1, 1], [], []>, precision = #tpu.contract_precision<fp32>} : vector<1x32xf32>, vector<32x256xf32>, vector<1x256xf32> -> vector<1x256xf32>
    %c24 = arith.constant 24 : index
    %c0_7 = arith.constant 0 : index
    %9 = vector.load %arg2[%c24, %c0_7] : memref<49x256xf32, #tpu.memory_space<vmem>>, vector<1x256xf32>
    %c3 = arith.constant 3 : index
    %10 = memref.load %arg1[%c3] : memref<4xf32, #tpu.memory_space<smem>>
    %11 = vector.broadcast %10 : f32 to vector<1x256xf32>
    %12 = arith.addf %9, %11 : vector<1x256xf32>
    %13 = arith.mulf %12, %12 : vector<1x256xf32>
    %14 = arith.addf %8, %13 : vector<1x256xf32>
    %c0_8 = arith.constant 0 : index
    %15 = memref.load %arg1[%c0_8] : memref<4xf32, #tpu.memory_space<smem>>
    %16 = vector.broadcast %15 : f32 to vector<1x256xf32>
    %17 = arith.mulf %14, %16 : vector<1x256xf32>
    %18 = math.exp %17 : vector<1x256xf32>
    %c1 = arith.constant 1 : index
    %19 = memref.load %arg1[%c1] : memref<4xf32, #tpu.memory_space<smem>>
    %20 = vector.broadcast %19 : f32 to vector<1x256xf32>
    %21 = arith.mulf %18, %20 : vector<1x256xf32>
    %c2 = arith.constant 2 : index
    %22 = memref.load %arg1[%c2] : memref<4xf32, #tpu.memory_space<smem>>
    %23 = vector.broadcast %22 : f32 to vector<1x256xf32>
    %24 = arith.addf %21, %23 : vector<1x256xf32>
    %25 = arith.negf %24 : vector<1x256xf32>
    %26 = math.exp %25 : vector<1x256xf32>
    %cst_9 = arith.constant 1.000000e+00 : f32
    %27 = vector.broadcast %cst_9 : f32 to vector<1x256xf32>
    %28 = arith.addf %27, %26 : vector<1x256xf32>
    %29 = arith.divf %27, %28 : vector<1x256xf32>
    %c0_10 = arith.constant 0 : index
    %c0_11 = arith.constant 0 : index
    %30 = vector.load %arg5[%c0_10, %c0_11] : memref<1x256xf32, #tpu.memory_space<vmem>>, vector<1x256xf32>
    tpu.vector_store %arg5[%c0_10, %c0_11], %29 {strides = array<i32>} : memref<1x256xf32, #tpu.memory_space<vmem>>, vector<1x256xf32>,
    return
  }
  func.func @transform_0(%arg0: i32) -> i32 {
    %c0_i32 = arith.constant 0 : i32
    %c0_i32_0 = arith.constant 0 : i32
    return %c0_i32 : i32
  }
  func.func @transform_1(%arg0: i32) -> (i32, i32) {
    %c0_i32 = arith.constant 0 : i32
    %c0_i32_0 = arith.constant 0 : i32
    return %c0_i32, %arg0 : i32, i32
  }
  func.func @transform_2(%arg0: i32) -> (i32, i32) {
    %c0_i32 = arith.constant 0 : i32
    %c0_i32_0 = arith.constant 0 : i32
    %c0_i32_1 = arith.constant 0 : i32
    return %c0_i32, %c0_i32_0 : i32, i32
  }
  func.func @transform_3(%arg0: i32) -> (i32, i32) {
    %c0_i32 = arith.constant 0 : i32
    %c0_i32_0 = arith.constant 0 : i32
    %c0_i32_1 = arith.constant 0 : i32
    return %c0_i32, %c0_i32_0 : i32, i32
  }
  func.func @transform_4(%arg0: i32) -> (i32, i32) {
    %c0_i32 = arith.constant 0 : i32
    %c0_i32_0 = arith.constant 0 : i32
    return %c0_i32, %arg0 : i32, i32
  }
}

</mosaic_0001>

<llo_original>
// kernel: conv_svm_forward.1
$region0: #{conv_svm_forward.1}
  #allocation0 [shape = 'u32[]', space=smem, size = 0x4, offset = 0x4, fixed_abs, tag = 'smem constant byte address 0x4 - core index']
  #allocation1 [shape = 'u32[72,128]{1,0:T(1,128)}', space=vmem, size = 0x9000, scoped, tag = 'internal scratch']
  %s0 = inlined_call_operand.vmem [shape: f32[4], index: 0, kind: input, shape index: {}]
  %s1 = inlined_call_operand.vmem [shape: f32[49,512], index: 1, kind: input, shape index: {}]
  %s2 = inlined_call_operand.vmem [shape: f32[32,49], index: 2, kind: input, shape index: {}]
  %s3 = inlined_call_operand.vmem [shape: f32[32,1], index: 3, kind: input, shape index: {}]
  %s4 = inlined_call_operand.vmem [shape: f32[1,512], index: 4, kind: output, shape index: {}]
  %s5 = sld [smem:[#allocation0]]
  $region76: #{conv_svm_forward.1} parent=0
    _
  %s7 = ssub.s32 1, %s5
  %s8 = scalar_select 0, %s7, %s5
  $region1: #{conv_svm_forward.1} parent=0
    #allocation2 [shape = 'u8[512]{0}', space=smem, size = 0x200, scoped, tag = 'input window, operand 0, single buffered']
    #allocation3 [shape = 's32[2]{0}', space=sflag, size = 0x8, scoped, tag = 'scoped memory for conv_svm_forward.1']
    #allocation4 [shape = 'u8[114688]{0}', space=vmem, size = 0x1c000, scoped, tag = 'input window, operand 1']
    %9 = vsyncpa [#allocation3], 0
    loop: start=0, step=1, limit=4
    $region2: #{conv_svm_forward.1} parent=1 // loop_pre_header
      _
    $region3: #{conv_svm_forward.1} parent=1 // loop_header
      %s11 = sphi 0, %s15
      %p12 = scmp.ge.s32.totalorder %s11, 4
      %s19 = sphi 0, %s19
      %s21 = sphi 0, %s19
      %s22 = sphi 0, %s21
      %s36 = sphi 0, %s22
      %s42 = sphi 0, %s44
      %s45 = sphi 0, %s42
      %s46 = sphi 0, %s45
      %s62 = sphi 0, %s46
      %s66 = sphi 0, %s66
      %s68 = sphi 0, %s66
      %s69 = sphi 0, %s68
      %s83 = sphi 0, %s69
      %s87 = sphi 0, %s87
      %s89 = sphi 0, %s87
      %s90 = sphi 0, %s89
      %s104 = sphi 0, %s90
      %s110 = sphi 0, %s112
      %s113 = sphi 0, %s110
      %s114 = sphi 0, %s113
      %s130 = sphi 0, %s114
    $region4: #{conv_svm_forward.1} parent=1 // loop_header_branch
      %14 = sbr.rel (%p12) target = $region8
    $region5: #{conv_svm_forward.1} parent=1 // loop_body
      %s16 = ssub.s32 %s11, 1
      %s17 = ssub.s32 %s11, 2
      %s18 = sadd.s32 %s11, 1
      %s20 = sadd.s32 %s19, 1
      %p23 = scmp.eq.s32.totalorder %s11, 1
      %p24 = scmp.ne.s32.totalorder %s19, %s21
      %p25 = scmp.eq.s32.totalorder %s11, 0
      %p26 = por %p24, %p25
      %p27 = scmp.ne.s32.totalorder %s19, %s21
      %p28 = scmp.eq.s32.totalorder %s16, 1
      %p29 = por %p27, %p28
      %p30 = scmp.ne.s32.totalorder %s21, %s22
      %p31 = scmp.eq.s32.totalorder %s16, 0
      %p32 = por %p30, %p31
      %p33 = scmp.ne.s32.totalorder %s21, %s22
      %p34 = scmp.eq.s32.totalorder %s17, 1
      %p35 = por %p33, %p34
      %p37 = scmp.ne.s32.totalorder %s22, %s36
      %p38 = scmp.eq.s32.totalorder %s17, 0
      %p39 = por %p37, %p38
      %s40 = ssub.s32 %s11, %s18
      %p41 = scmp.eq.s32.totalorder %s40, 0
      %s43 = sadd.s32 %s42, 1
      %s44 = scalar_select %p41, %s42, %s43
      %p47 = pneg %p41
      %p48 = scmp.eq.s32.totalorder %s11, 1
      %p49 = por %p47, %p48
      %p50 = scmp.ne.s32.totalorder %s42, %s45
      %p51 = scmp.eq.s32.totalorder %s11, 0
      %p52 = por %p50, %p51
      %p53 = scmp.ne.s32.totalorder %s42, %s45
      %p54 = scmp.eq.s32.totalorder %s16, 1
      %p55 = por %p53, %p54
      %p56 = scmp.ne.s32.totalorder %s45, %s46
      %p57 = scmp.eq.s32.totalorder %s16, 0
      %p58 = por %p56, %p57
      %p59 = scmp.ne.s32.totalorder %s45, %s46
      %p60 = scmp.eq.s32.totalorder %s17, 1
      %p61 = por %p59, %p60
      %p63 = scmp.ne.s32.totalorder %s46, %s62
      %p64 = scmp.eq.s32.totalorder %s17, 0
      %p65 = por %p63, %p64
      %s67 = sadd.s32 %s66, 1
      %p70 = scmp.eq.s32.totalorder %s11, 1
      %p71 = scmp.ne.s32.totalorder %s66, %s68
      %p72 = scmp.eq.s32.totalorder %s11, 0
      %p73 = por %p71, %p72
      %p74 = scmp.ne.s32.totalorder %s66, %s68
      %p75 = scmp.eq.s32.totalorder %s16, 1
      %p76 = por %p74, %p75
      %p77 = scmp.ne.s32.totalorder %s68, %s69
      %p78 = scmp.eq.s32.totalorder %s16, 0
      %p79 = por %p77, %p78
      %p80 = scmp.ne.s32.totalorder %s68, %s69
      %p81 = scmp.eq.s32.totalorder %s17, 1
      %p82 = por %p80, %p81
      %p84 = scmp.ne.s32.totalorder %s69, %s83
      %p85 = scmp.eq.s32.totalorder %s17, 0
      %p86 = por %p84, %p85
      %s88 = sadd.s32 %s87, 1
      %p91 = scmp.eq.s32.totalorder %s11, 1
      %p92 = scmp.ne.s32.totalorder %s87, %s89
      %p93 = scmp.eq.s32.totalorder %s11, 0
      %p94 = por %p92, %p93
      %p95 = scmp.ne.s32.totalorder %s87, %s89
      %p96 = scmp.eq.s32.totalorder %s16, 1
      %p97 = por %p95, %p96
      %p98 = scmp.ne.s32.totalorder %s89, %s90
      %p99 = scmp.eq.s32.totalorder %s16, 0
      %p100 = por %p98, %p99
      %p101 = scmp.ne.s32.totalorder %s89, %s90
      %p102 = scmp.eq.s32.totalorder %s17, 1
      %p103 = por %p101, %p102
      %p105 = scmp.ne.s32.totalorder %s90, %s104
      %p106 = scmp.eq.s32.totalorder %s17, 0
      %p107 = por %p105, %p106
      %s108 = ssub.s32 %s11, %s18
      %p109 = scmp.eq.s32.totalorder %s108, 0
      %s111 = sadd.s32 %s110, 1
      %s112 = scalar_select %p109, %s110, %s111
      %p115 = pneg %p109
      %p116 = scmp.eq.s32.totalorder %s11, 1
      %p117 = por %p115, %p116
      %p118 = scmp.ne.s32.totalorder %s110, %s113
      %p119 = scmp.eq.s32.totalorder %s11, 0
      %p120 = por %p118, %p119
      %p121 = scmp.ne.s32.totalorder %s110, %s113
      %p122 = scmp.eq.s32.totalorder %s16, 1
      %p123 = por %p121, %p122
      %p124 = scmp.ne.s32.totalorder %s113, %s114
      %p125 = scmp.eq.s32.totalorder %s16, 0
      %p126 = por %p124, %p125
      %p127 = scmp.ne.s32.totalorder %s113, %s114
      %p128 = scmp.eq.s32.totalorder %s17, 1
      %p129 = por %p127, %p128
      %p131 = scmp.ne.s32.totalorder %s114, %s130
      %p132 = scmp.eq.s32.totalorder %s17, 0
      %p133 = por %p131, %p132
      %p134 = scmp.le.s32.totalorder 1, %s11
      %p135 = scmp.lt.s32.totalorder %s11, 3
      %p136 = pnand %p134, %p135
      %p137 = pneg %p136
      // Predicated region
      $region9: #{conv_svm_forward.1} parent=5 // pred_check
        _
      $region10: #{conv_svm_forward.1} parent=5 // pred_check_branch
        %139 = sbr.rel (%p136) target = $region12
      $region11: #{conv_svm_forward.1} parent=5 // pred_region
        %s140 = ssub.s32 %s11, 1
        // Predicated region
        $region13: #{conv_svm_forward.1} parent=11 // pred_check
          %p141 = pneg %p32
        $region14: #{conv_svm_forward.1} parent=11 // pred_check_branch
          %143 = sbr.rel (%p141) target = $region16
        $region15: #{conv_svm_forward.1} parent=11 // pred_region
          %145 = vsyncadd [#allocation3], 0
          %s147 = sshll.u32 %s0, 4
          %s148 = int_to_ptr.vmem [resolvable:$true] %s147
          %150 = dma.vmem_to_smem %s148, 16, [#allocation2], [#allocation3]
        $region16: #{conv_svm_forward.1} parent=11 // pred_fallthru
          _
        // Predicated region
        $region17: #{conv_svm_forward.1} parent=11 // pred_check
          %p151 = pneg %p79
        $region18: #{conv_svm_forward.1} parent=11 // pred_check_branch
          %153 = sbr.rel (%p151) target = $region20
        $region19: #{conv_svm_forward.1} parent=11 // pred_region
          _
        $region20: #{conv_svm_forward.1} parent=11 // pred_fallthru
          _
        // Predicated region
        $region21: #{conv_svm_forward.1} parent=11 // pred_check
          %p154 = pneg %p100
        $region22: #{conv_svm_forward.1} parent=11 // pred_check_branch
          %156 = sbr.rel (%p154) target = $region24
        $region23: #{conv_svm_forward.1} parent=11 // pred_region
          _
        $region24: #{conv_svm_forward.1} parent=11 // pred_fallthru
          _
      $region12: #{conv_svm_forward.1} parent=5 // pred_fallthru
        _
      %p157 = scmp.lt.s32.totalorder %s11, 2
      // Predicated region
      $region25: #{conv_svm_forward.1} parent=5 // pred_check
        %p158 = pneg %p157
      $region26: #{conv_svm_forward.1} parent=5 // pred_check_branch
        %160 = sbr.rel (%p158) target = $region28
      $region27: #{conv_svm_forward.1} parent=5 // pred_region
        // Predicated region
        $region29: #{conv_svm_forward.1} parent=27 // pred_check
          %p161 = pneg %p52
        $region30: #{conv_svm_forward.1} parent=27 // pred_check_branch
          %163 = sbr.rel (%p161) target = $region32
        $region31: #{conv_svm_forward.1} parent=27 // pred_region
          %s164 = sand.u32 %s42, 1
          %s165 = sand.u32 %s42, 1
          %s166 = smul.addr %s165, 112
          %s167 = scalar_lea.vmem [#allocation4], %s166
          %s168 = smul.u32 2, %s11
          %s169 = smul.addr %s168, 8
          %s170 = scalar_lea.vmem %s1, %s169
          // Predicated region
          $region33: #{conv_svm_forward.1} parent=31 // pred_check
            _
          $region34: #{conv_svm_forward.1} parent=31 // pred_check_branch
            %172 = sbr.rel (0) target = $region36
          $region35: #{conv_svm_forward.1} parent=31 // pred_region
            // Predicated region
            $region37: #{conv_svm_forward.1} parent=35 // pred_check
              _
            $region38: #{conv_svm_forward.1} parent=35 // pred_check_branch
              %174 = sbr.rel (0) target = $region40
            $region39: #{conv_svm_forward.1} parent=35 // pred_region
              loop: start=0, step=1, limit=1
              $region41: #{conv_svm_forward.1} parent=39 // loop_pre_header
                _
              $region42: #{conv_svm_forward.1} parent=39 // loop_header
                %s176 = sphi 0, %s180
                %p177 = scmp.ge.s32.totalorder %s176, 1
                %s181 = sphi %s170, %s170
                %s182 = sphi %s167, %s167
              $region43: #{conv_svm_forward.1} parent=39 // loop_header_branch
                %179 = sbr.rel (%p177) target = $region47
              $region44: #{conv_svm_forward.1} parent=39 // loop_body
                %v183 = vld [vmem:[%s181] sm:$0xff]
                %184 = vst [vmem:[%s182] sm:$0xff] %v183
                %v185 = vld [vmem:[%s181 + $0x8] sm:$0xff]
                %186 = vst [vmem:[%s182 + $0x8] sm:$0xff] %v185
                %v187 = vld [vmem:[%s181 + $0x20] sm:$0xff]
                %188 = vst [vmem:[%s182 + $0x10] sm:$0xff] %v187
                %v189 = vld [vmem:[%s181 + $0x28] sm:$0xff]
                %190 = vst [vmem:[%s182 + $0x18] sm:$0xff] %v189
                %v191 = vld [vmem:[%s181 + $0x40] sm:$0xff]
                %192 = vst [vmem:[%s182 + $0x20] sm:$0xff] %v191
                %v193 = vld [vmem:[%s181 + $0x48] sm:$0xff]
                %194 = vst [vmem:[%s182 + $0x28] sm:$0xff] %v193
                %v195 = vld [vmem:[%s181 + $0x60] sm:$0xff]
                %196 = vst [vmem:[%s182 + $0x30] sm:$0xff] %v195
                %v197 = vld [vmem:[%s181 + $0x68] sm:$0xff]
                %198 = vst [vmem:[%s182 + $0x38] sm:$0xff] %v197
                %v199 = vld [vmem:[%s181 + $0x80] sm:$0xff]
                %200 = vst [vmem:[%s182 + $0x40] sm:$0xff] %v199
                %v201 = vld [vmem:[%s181 + $0x88] sm:$0xff]
                %202 = vst [vmem:[%s182 + $0x48] sm:$0xff] %v201
                %v203 = vld [vmem:[%s181 + $0xa0] sm:$0xff]
                %204 = vst [vmem:[%s182 + $0x50] sm:$0xff] %v203
                %v205 = vld [vmem:[%s181 + $0xa8] sm:$0xff]
                %206 = vst [vmem:[%s182 + $0x58] sm:$0xff] %v205
                %v207 = vld [vmem:[%s181 + $0xc0] sm:$0xff]
                %208 = vst [vmem:[%s182 + $0x60] sm:$0xff] %v207
                %v209 = vld [vmem:[%s181 + $0xc8] sm:$0xff]
                %210 = vst [vmem:[%s182 + $0x68] sm:$0xff] %v209
              $region45: #{conv_svm_forward.1} parent=39 // loop_footer
                %s180 = sadd.s32 1, %s176
              $region46: #{conv_svm_forward.1} parent=39 // loop_footer_branch
                %175 = sbr.rel target = $region42
              $region47: #{conv_svm_forward.1} parent=39 // loop_exit
                _
            $region40: #{conv_svm_forward.1} parent=35 // pred_fallthru
              _
            // Predicated region
            $region48: #{conv_svm_forward.1} parent=35 // pred_check
              _
            $region49: #{conv_svm_forward.1} parent=35 // pred_check_branch
              %212 = sbr.rel target = $region51
            $region50: #{conv_svm_forward.1} parent=35 // pred_region
              _
            $region51: #{conv_svm_forward.1} parent=35 // pred_fallthru
              _
          $region36: #{conv_svm_forward.1} parent=31 // pred_fallthru
            _
          %213 = vnop
        $region32: #{conv_svm_forward.1} parent=27 // pred_fallthru
          _
      $region28: #{conv_svm_forward.1} parent=5 // pred_fallthru
        _
      %p214 = scmp.le.s32.totalorder 1, %s11
      %p215 = scmp.lt.s32.totalorder %s11, 3
      %p216 = pnand %p214, %p215
      %p217 = pneg %p216
      // Predicated region
      $region52: #{conv_svm_forward.1} parent=5 // pred_check
        _
      $region53: #{conv_svm_forward.1} parent=5 // pred_check_branch
        %219 = sbr.rel (%p216) target = $region55
      $region54: #{conv_svm_forward.1} parent=5 // pred_region
        %s220 = ssub.s32 %s11, 1
        // Predicated region
        $region56: #{conv_svm_forward.1} parent=54 // pred_check
          %p221 = pneg %p32
        $region57: #{conv_svm_forward.1} parent=54 // pred_check_branch
          %223 = sbr.rel (%p221) target = $region59
        $region58: #{conv_svm_forward.1} parent=54 // pred_region
          %225 = dma.done [#allocation3], 16
        $region59: #{conv_svm_forward.1} parent=54 // pred_fallthru
          _
        %s226 = sand.u32 %s45, 1
        %s227 = sand.u32 %s45, 1
        %s228 = smul.addr %s227, 112
        %s229 = scalar_lea.vmem [#allocation4], %s228
        // Predicated region
        $region60: #{conv_svm_forward.1} parent=54 // pred_check
          %p230 = pneg %p58
        $region61: #{conv_svm_forward.1} parent=54 // pred_check_branch
          %232 = sbr.rel (%p230) target = $region63
        $region62: #{conv_svm_forward.1} parent=54 // pred_region
          _
        $region63: #{conv_svm_forward.1} parent=54 // pred_fallthru
          _
        %233 = sfence
        %p234 = pneg %p32
        %p235 = pneg %p29
        %s236 = sand.u32 %s45, 1
        %s237 = sand.u32 %s45, 1
        %s238 = smul.addr %s237, 112
        %s239 = scalar_lea.vmem [#allocation4], %s238
        %p240 = pneg %p58
        %p241 = pneg %p55
        %p242 = pneg %p79
        %p243 = pneg %p76
        %p244 = pneg %p100
        %p245 = pneg %p97
        %p246 = pneg %p126
        %p247 = pneg %p123
        %s248 = smul.u32 2, %s16
        %p249 = scmp.lt.s32.totalorder %s248, 3
        %s250 = scalar_select %p249, %s248, 3
        %s251 = scalar_lea.vmem %s4, %s250
        %s252 = smul.u32 2, %s16
        %s253 = smul.u32 2, %s16
        %p254 = scmp.lt.s32.totalorder %s253, 3
        %s255 = scalar_select %p254, %s253, 3
        %s256 = scalar_lea.vmem %s4, %s255
        %s257 = smul.u32 2, %s16
        %v258 = vld [vmem:[%s2] sm:$0xff]
        %v259 = vld [vmem:[%s2 + $0x8] sm:$0xff]
        %v260 = vld [vmem:[%s2 + $0x10] sm:$0xff]
        %v261 = vld [vmem:[%s2 + $0x18] sm:$0xff]
        %v262 = vld [vmem:[%s229] sm:$0xff]
        %v263 = vld [vmem:[%s229 + $0x8] sm:$0xff]
        %v264 = vld [vmem:[%s229 + $0x10] sm:$0xff]
        %v265 = vld [vmem:[%s229 + $0x18] sm:$0xff]
        %v266 = vld [vmem:[%s229 + $0x20] sm:$0xff]
        %v267 = vld [vmem:[%s229 + $0x28] sm:$0xff]
        %v268 = vld [vmem:[%s229 + $0x30] sm:$0xff]
        %v269 = vld [vmem:[%s229 + $0x38] sm:$0xff]
        %v270 = vld [vmem:[%s229 + $0x40] sm:$0xff]
        %v271 = vld [vmem:[%s229 + $0x48] sm:$0xff]
        %v272 = vld [vmem:[%s229 + $0x50] sm:$0xff]
        %v273 = vld [vmem:[%s229 + $0x58] sm:$0xff]
        %v274 = vld [vmem:[%s229 + $0x60] sm:$0x1]
        %v275 = vld [vmem:[%s229 + $0x68] sm:$0x1]
        %v276 = vld [vmem:[%s3] sm:$0xff]
        %v277 = vld [vmem:[%s3 + $0x8] sm:$0xff]
        %v278 = vld [vmem:[%s3 + $0x10] sm:$0xff]
        %v279 = vld [vmem:[%s3 + $0x18] sm:$0xff]
        %281 = vset.pattern.permute.xlu0 0
        %282 = vperm.xlu0 %281, %v276
        %v283 = vpop.permute.xlu0 %282
        %286 = vset.pattern.permute.xlu0 0
        %287 = vperm.xlu0 %286, %v277
        %v288 = vpop.permute.xlu0 %287
        %291 = vset.pattern.permute.xlu0 0
        %292 = vperm.xlu0 %291, %v278
        %v293 = vpop.permute.xlu0 %292
        %296 = vset.pattern.permute.xlu0 0
        %297 = vperm.xlu0 %296, %v279
        %v298 = vpop.permute.xlu0 %297
        %vm300 = vcmask 400384
        %v302 = vsel %vm300, %v258, 0
        %v305 = vsel %vm300, %v259, 0
        %v308 = vsel %vm300, %v260, 0
        %v311 = vsel %vm300, %v261, 0
        %vm313 = vcmask 1040384
        %v315 = vsel %vm313, %v274, 0
        %v318 = vsel %vm313, %v275, 0
        %320 = vmatpush.msra.mxu0 0.0
        %321 = vmatpush.msra.mxu0 0.0
        %322 = vmatpush.msra.mxu0 0.0
        %323 = vmatpush.msra.mxu0 0.0
        %324 = vmatpush.msra.mxu0 0.0
        %325 = vmatpush.msra.mxu0 0.0
        %326 = vmatpush.msra.mxu0 0.0
        %327 = vmatpush.msra.mxu0 0.0
        %328 = vmatpush.msra.mxu0 0.0
        %v329 = vand.u32 %v315, 4294901760
        %330 = vmatpush.msra.mxu0 %v329
        %v331 = vand.u32 %v272, 4294901760
        %332 = vmatpush.msra.mxu0 %v331
        %v333 = vand.u32 %v270, 4294901760
        %334 = vmatpush.msra.mxu0 %v333
        %v335 = vand.u32 %v268, 4294901760
        %336 = vmatpush.msra.mxu0 %v335
        %v337 = vand.u32 %v266, 4294901760
        %338 = vmatpush.msra.mxu0 %v337
        %v339 = vand.u32 %v264, 4294901760
        %340 = vmatpush.msra.mxu0 %v339
        %v341 = vand.u32 %v262, 4294901760
        %342 = vmatpush.msra.mxu0 %v341
        %v343 = vand.u32 %v302, 4294901760
        %v344 = vsub.f32 %v302, %v343
        %v345 = vand.u32 %v344, 4294901760
        %v346 = vsub.f32 %v344, %v345
        %v347 = vand.u32 %v346, 4294901760
        %348 = vmatmul.f32.gmra.mxu0 %v347
        %v349 = vpop.f32.mrf.mxu0
        %v350 = vadd.f32 %v283, %v349
        %v351 = vand.u32 %v305, 4294901760
        %v352 = vsub.f32 %v305, %v351
        %v353 = vand.u32 %v352, 4294901760
        %v354 = vsub.f32 %v352, %v353
        %v355 = vand.u32 %v354, 4294901760
        %356 = vmatmul.f32.gmra.mxu0 %v355
        %v357 = vpop.f32.mrf.mxu0
        %v358 = vadd.f32 %v288, %v357
        %v359 = vand.u32 %v308, 4294901760
        %v360 = vsub.f32 %v308, %v359
        %v361 = vand.u32 %v360, 4294901760
        %v362 = vsub.f32 %v360, %v361
        %v363 = vand.u32 %v362, 4294901760
        %364 = vmatmul.f32.gmra.mxu0 %v363
        %v365 = vpop.f32.mrf.mxu0
        %v366 = vadd.f32 %v293, %v365
        %v367 = vand.u32 %v311, 4294901760
        %v368 = vsub.f32 %v311, %v367
        %v369 = vand.u32 %v368, 4294901760
        %v370 = vsub.f32 %v368, %v369
        %v371 = vand.u32 %v370, 4294901760
        %372 = vmatmul.f32.gmra.mxu0 %v371
        %v373 = vpop.f32.mrf.mxu0
        %v374 = vadd.f32 %v298, %v373
        %375 = vdwg.mxu0
        %376 = vmatpush.msra.mxu0 0.0
        %377 = vmatpush.msra.mxu0 0.0
        %378 = vmatpush.msra.mxu0 0.0
        %379 = vmatpush.msra.mxu0 0.0
        %380 = vmatpush.msra.mxu0 0.0
        %381 = vmatpush.msra.mxu0 0.0
        %382 = vmatpush.msra.mxu0 0.0
        %383 = vmatpush.msra.mxu0 0.0
        %384 = vmatpush.msra.mxu0 0.0
        %v385 = vand.u32 %v315, 4294901760
        %v386 = vsub.f32 %v315, %v385
        %v387 = vand.u32 %v386, 4294901760
        %v388 = vsub.f32 %v386, %v387
        %v389 = vand.u32 %v388, 4294901760
        %390 = vmatpush.msra.mxu0 %v389
        %v391 = vand.u32 %v272, 4294901760
        %v392 = vsub.f32 %v272, %v391
        %v393 = vand.u32 %v392, 4294901760
        %v394 = vsub.f32 %v392, %v393
        %v395 = vand.u32 %v394, 4294901760
        %396 = vmatpush.msra.mxu0 %v395
        %v397 = vand.u32 %v270, 4294901760
        %v398 = vsub.f32 %v270, %v397
        %v399 = vand.u32 %v398, 4294901760
        %v400 = vsub.f32 %v398, %v399
        %v401 = vand.u32 %v400, 4294901760
        %402 = vmatpush.msra.mxu0 %v401
        %v403 = vand.u32 %v268, 4294901760
        %v404 = vsub.f32 %v268, %v403
        %v405 = vand.u32 %v404, 4294901760
        %v406 = vsub.f32 %v404, %v405
        %v407 = vand.u32 %v406, 4294901760
        %408 = vmatpush.msra.mxu0 %v407
        %v409 = vand.u32 %v266, 4294901760
        %v410 = vsub.f32 %v266, %v409
        %v411 = vand.u32 %v410, 4294901760
        %v412 = vsub.f32 %v410, %v411
        %v413 = vand.u32 %v412, 4294901760
        %414 = vmatpush.msra.mxu0 %v413
        %v415 = vand.u32 %v264, 4294901760
        %v416 = vsub.f32 %v264, %v415
        %v417 = vand.u32 %v416, 4294901760
        %v418 = vsub.f32 %v416, %v417
        %v419 = vand.u32 %v418, 4294901760
        %420 = vmatpush.msra.mxu0 %v419
        %v421 = vand.u32 %v262, 4294901760
        %v422 = vsub.f32 %v262, %v421
        %v423 = vand.u32 %v422, 4294901760
        %v424 = vsub.f32 %v422, %v423
        %v425 = vand.u32 %v424, 4294901760
        %426 = vmatpush.msra.mxu0 %v425
        %v427 = vand.u32 %v302, 4294901760
        %428 = vmatmul.f32.gmra.mxu0 %v427
        %v429 = vpop.f32.mrf.mxu0
        %v430 = vadd.f32 %v350, %v429
        %v431 = vand.u32 %v305, 4294901760
        %432 = vmatmul.f32.gmra.mxu0 %v431
        %v433 = vpop.f32.mrf.mxu0
        %v434 = vadd.f32 %v358, %v433
        %v435 = vand.u32 %v308, 4294901760
        %436 = vmatmul.f32.gmra.mxu0 %v435
        %v437 = vpop.f32.mrf.mxu0
        %v438 = vadd.f32 %v366, %v437
        %v439 = vand.u32 %v311, 4294901760
        %440 = vmatmul.f32.gmra.mxu0 %v439
        %v441 = vpop.f32.mrf.mxu0
        %v442 = vadd.f32 %v374, %v441
        %443 = vdwg.mxu0
        %444 = vmatpush.msra.mxu0 0.0
        %445 = vmatpush.msra.mxu0 0.0
        %446 = vmatpush.msra.mxu0 0.0
        %447 = vmatpush.msra.mxu0 0.0
        %448 = vmatpush.msra.mxu0 0.0
        %449 = vmatpush.msra.mxu0 0.0
        %450 = vmatpush.msra.mxu0 0.0
        %451 = vmatpush.msra.mxu0 0.0
        %452 = vmatpush.msra.mxu0 0.0
        %v453 = vand.u32 %v315, 4294901760
        %v454 = vsub.f32 %v315, %v453
        %455 = vmatpush.msra.mxu0 %v454
        %v456 = vand.u32 %v272, 4294901760
        %v457 = vsub.f32 %v272, %v456
        %458 = vmatpush.msra.mxu0 %v457
        %v459 = vand.u32 %v270, 4294901760
        %v460 = vsub.f32 %v270, %v459
        %461 = vmatpush.msra.mxu0 %v460
        %v462 = vand.u32 %v268, 4294901760
        %v463 = vsub.f32 %v268, %v462
        %464 = vmatpush.msra.mxu0 %v463
        %v465 = vand.u32 %v266, 4294901760
        %v466 = vsub.f32 %v266, %v465
        %467 = vmatpush.msra.mxu0 %v466
        %v468 = vand.u32 %v264, 4294901760
        %v469 = vsub.f32 %v264, %v468
        %470 = vmatpush.msra.mxu0 %v469
        %v471 = vand.u32 %v262, 4294901760
        %v472 = vsub.f32 %v262, %v471
        %473 = vmatpush.msra.mxu0 %v472
        %v474 = vand.u32 %v302, 4294901760
        %v475 = vsub.f32 %v302, %v474
        %476 = vmatmul.f32.gmra.mxu0 %v475
        %v477 = vpop.f32.mrf.mxu0
        %v478 = vadd.f32 %v430, %v477
        %v479 = vand.u32 %v305, 4294901760
        %v480 = vsub.f32 %v305, %v479
        %481 = vmatmul.f32.gmra.mxu0 %v480
        %v482 = vpop.f32.mrf.mxu0
        %v483 = vadd.f32 %v434, %v482
        %v484 = vand.u32 %v308, 4294901760
        %v485 = vsub.f32 %v308, %v484
        %486 = vmatmul.f32.gmra.mxu0 %v485
        %v487 = vpop.f32.mrf.mxu0
        %v488 = vadd.f32 %v438, %v487
        %v489 = vand.u32 %v311, 4294901760
        %v490 = vsub.f32 %v311, %v489
        %491 = vmatmul.f32.gmra.mxu0 %v490
        %v492 = vpop.f32.mrf.mxu0
        %v493 = vadd.f32 %v442, %v492
        %494 = vdwg.mxu0
        %495 = vmatpush.msra.mxu0 0.0
        %496 = vmatpush.msra.mxu0 0.0
        %497 = vmatpush.msra.mxu0 0.0
        %498 = vmatpush.msra.mxu0 0.0
        %499 = vmatpush.msra.mxu0 0.0
        %500 = vmatpush.msra.mxu0 0.0
        %501 = vmatpush.msra.mxu0 0.0
        %502 = vmatpush.msra.mxu0 0.0
        %503 = vmatpush.msra.mxu0 0.0
        %v504 = vand.u32 %v315, 4294901760
        %505 = vmatpush.msra.mxu0 %v504
        %v506 = vand.u32 %v272, 4294901760
        %507 = vmatpush.msra.mxu0 %v506
        %v508 = vand.u32 %v270, 4294901760
        %509 = vmatpush.msra.mxu0 %v508
        %v510 = vand.u32 %v268, 4294901760
        %511 = vmatpush.msra.mxu0 %v510
        %v512 = vand.u32 %v266, 4294901760
        %513 = vmatpush.msra.mxu0 %v512
        %v514 = vand.u32 %v264, 4294901760
        %515 = vmatpush.msra.mxu0 %v514
        %v516 = vand.u32 %v262, 4294901760
        %517 = vmatpush.msra.mxu0 %v516
        %v518 = vand.u32 %v302, 4294901760
        %v519 = vsub.f32 %v302, %v518
        %v520 = vand.u32 %v519, 4294901760
        %521 = vmatmul.f32.gmra.mxu0 %v520
        %v522 = vpop.f32.mrf.mxu0
        %v523 = vadd.f32 %v478, %v522
        %v524 = vand.u32 %v305, 4294901760
        %v525 = vsub.f32 %v305, %v524
        %v526 = vand.u32 %v525, 4294901760
        %527 = vmatmul.f32.gmra.mxu0 %v526
        %v528 = vpop.f32.mrf.mxu0
        %v529 = vadd.f32 %v483, %v528
        %v530 = vand.u32 %v308, 4294901760
        %v531 = vsub.f32 %v308, %v530
        %v532 = vand.u32 %v531, 4294901760
        %533 = vmatmul.f32.gmra.mxu0 %v532
        %v534 = vpop.f32.mrf.mxu0
        %v535 = vadd.f32 %v488, %v534
        %v536 = vand.u32 %v311, 4294901760
        %v537 = vsub.f32 %v311, %v536
        %v538 = vand.u32 %v537, 4294901760
        %539 = vmatmul.f32.gmra.mxu0 %v538
        %v540 = vpop.f32.mrf.mxu0
        %v541 = vadd.f32 %v493, %v540
        %542 = vdwg.mxu0
        %543 = vmatpush.msra.mxu0 0.0
        %544 = vmatpush.msra.mxu0 0.0
        %545 = vmatpush.msra.mxu0 0.0
        %546 = vmatpush.msra.mxu0 0.0
        %547 = vmatpush.msra.mxu0 0.0
        %548 = vmatpush.msra.mxu0 0.0
        %549 = vmatpush.msra.mxu0 0.0
        %550 = vmatpush.msra.mxu0 0.0
        %551 = vmatpush.msra.mxu0 0.0
        %v552 = vand.u32 %v315, 4294901760
        %v553 = vsub.f32 %v315, %v552
        %v554 = vand.u32 %v553, 4294901760
        %555 = vmatpush.msra.mxu0 %v554
        %v556 = vand.u32 %v272, 4294901760
        %v557 = vsub.f32 %v272, %v556
        %v558 = vand.u32 %v557, 4294901760
        %559 = vmatpush.msra.mxu0 %v558
        %v560 = vand.u32 %v270, 4294901760
        %v561 = vsub.f32 %v270, %v560
        %v562 = vand.u32 %v561, 4294901760
        %563 = vmatpush.msra.mxu0 %v562
        %v564 = vand.u32 %v268, 4294901760
        %v565 = vsub.f32 %v268, %v564
        %v566 = vand.u32 %v565, 4294901760
        %567 = vmatpush.msra.mxu0 %v566
        %v568 = vand.u32 %v266, 4294901760
        %v569 = vsub.f32 %v266, %v568
        %v570 = vand.u32 %v569, 4294901760
        %571 = vmatpush.msra.mxu0 %v570
        %v572 = vand.u32 %v264, 4294901760
        %v573 = vsub.f32 %v264, %v572
        %v574 = vand.u32 %v573, 4294901760
        %575 = vmatpush.msra.mxu0 %v574
        %v576 = vand.u32 %v262, 4294901760
        %v577 = vsub.f32 %v262, %v576
        %v578 = vand.u32 %v577, 4294901760
        %579 = vmatpush.msra.mxu0 %v578
        %v580 = vand.u32 %v302, 4294901760
        %581 = vmatmul.f32.gmra.mxu0 %v580
        %v582 = vpop.f32.mrf.mxu0
        %v583 = vadd.f32 %v523, %v582
        %v584 = vand.u32 %v305, 4294901760
        %585 = vmatmul.f32.gmra.mxu0 %v584
        %v586 = vpop.f32.mrf.mxu0
        %v587 = vadd.f32 %v529, %v586
        %v588 = vand.u32 %v308, 4294901760
        %589 = vmatmul.f32.gmra.mxu0 %v588
        %v590 = vpop.f32.mrf.mxu0
        %v591 = vadd.f32 %v535, %v590
        %v592 = vand.u32 %v311, 4294901760
        %593 = vmatmul.f32.gmra.mxu0 %v592
        %v594 = vpop.f32.mrf.mxu0
        %v595 = vadd.f32 %v541, %v594
        %596 = vdwg.mxu0
        %597 = vmatpush.msra.mxu0 0.0
        %598 = vmatpush.msra.mxu0 0.0
        %599 = vmatpush.msra.mxu0 0.0
        %600 = vmatpush.msra.mxu0 0.0
        %601 = vmatpush.msra.mxu0 0.0
        %602 = vmatpush.msra.mxu0 0.0
        %603 = vmatpush.msra.mxu0 0.0
        %604 = vmatpush.msra.mxu0 0.0
        %605 = vmatpush.msra.mxu0 0.0
        %v606 = vand.u32 %v315, 4294901760
        %607 = vmatpush.msra.mxu0 %v606
        %v608 = vand.u32 %v272, 4294901760
        %609 = vmatpush.msra.mxu0 %v608
        %v610 = vand.u32 %v270, 4294901760
        %611 = vmatpush.msra.mxu0 %v610
        %v612 = vand.u32 %v268, 4294901760
        %613 = vmatpush.msra.mxu0 %v612
        %v614 = vand.u32 %v266, 4294901760
        %615 = vmatpush.msra.mxu0 %v614
        %v616 = vand.u32 %v264, 4294901760
        %617 = vmatpush.msra.mxu0 %v616
        %v618 = vand.u32 %v262, 4294901760
        %619 = vmatpush.msra.mxu0 %v618
        %v620 = vand.u32 %v302, 4294901760
        %621 = vmatmul.f32.gmra.mxu0 %v620
        %v622 = vpop.f32.mrf.mxu0
        %v623 = vadd.f32 %v583, %v622
        %v624 = vand.u32 %v305, 4294901760
        %625 = vmatmul.f32.gmra.mxu0 %v624
        %v626 = vpop.f32.mrf.mxu0
        %v627 = vadd.f32 %v587, %v626
        %v628 = vand.u32 %v308, 4294901760
        %629 = vmatmul.f32.gmra.mxu0 %v628
        %v630 = vpop.f32.mrf.mxu0
        %v631 = vadd.f32 %v591, %v630
        %v632 = vand.u32 %v311, 4294901760
        %633 = vmatmul.f32.gmra.mxu0 %v632
        %v634 = vpop.f32.mrf.mxu0
        %v635 = vadd.f32 %v595, %v634
        %636 = vdwg.mxu0
        %637 = vmatpush.msra.mxu0 0.0
        %638 = vmatpush.msra.mxu0 0.0
        %639 = vmatpush.msra.mxu0 0.0
        %640 = vmatpush.msra.mxu0 0.0
        %641 = vmatpush.msra.mxu0 0.0
        %642 = vmatpush.msra.mxu0 0.0
        %643 = vmatpush.msra.mxu0 0.0
        %644 = vmatpush.msra.mxu0 0.0
        %645 = vmatpush.msra.mxu0 0.0
        %v646 = vand.u32 %v318, 4294901760
        %647 = vmatpush.msra.mxu0 %v646
        %v648 = vand.u32 %v273, 4294901760
        %649 = vmatpush.msra.mxu0 %v648
        %v650 = vand.u32 %v271, 4294901760
        %651 = vmatpush.msra.mxu0 %v650
        %v652 = vand.u32 %v269, 4294901760
        %653 = vmatpush.msra.mxu0 %v652
        %v654 = vand.u32 %v267, 4294901760
        %655 = vmatpush.msra.mxu0 %v654
        %v656 = vand.u32 %v265, 4294901760
        %657 = vmatpush.msra.mxu0 %v656
        %v658 = vand.u32 %v263, 4294901760
        %659 = vmatpush.msra.mxu0 %v658
        %v660 = vand.u32 %v302, 4294901760
        %v661 = vsub.f32 %v302, %v660
        %v662 = vand.u32 %v661, 4294901760
        %v663 = vsub.f32 %v661, %v662
        %v664 = vand.u32 %v663, 4294901760
        %665 = vmatmul.f32.gmra.mxu0 %v664
        %v666 = vpop.f32.mrf.mxu0
        %v667 = vadd.f32 %v283, %v666
        %v668 = vand.u32 %v305, 4294901760
        %v669 = vsub.f32 %v305, %v668
        %v670 = vand.u32 %v669, 4294901760
        %v671 = vsub.f32 %v669, %v670
        %v672 = vand.u32 %v671, 4294901760
        %673 = vmatmul.f32.gmra.mxu0 %v672
        %v674 = vpop.f32.mrf.mxu0
        %v675 = vadd.f32 %v288, %v674
        %v676 = vand.u32 %v308, 4294901760
        %v677 = vsub.f32 %v308, %v676
        %v678 = vand.u32 %v677, 4294901760
        %v679 = vsub.f32 %v677, %v678
        %v680 = vand.u32 %v679, 4294901760
        %681 = vmatmul.f32.gmra.mxu0 %v680
        %v682 = vpop.f32.mrf.mxu0
        %v683 = vadd.f32 %v293, %v682
        %v684 = vand.u32 %v311, 4294901760
        %v685 = vsub.f32 %v311, %v684
        %v686 = vand.u32 %v685, 4294901760
        %v687 = vsub.f32 %v685, %v686
        %v688 = vand.u32 %v687, 4294901760
        %689 = vmatmul.f32.gmra.mxu0 %v688
        %v690 = vpop.f32.mrf.mxu0
        %v691 = vadd.f32 %v298, %v690
        %692 = vdwg.mxu0
        %693 = vmatpush.msra.mxu0 0.0
        %694 = vmatpush.msra.mxu0 0.0
        %695 = vmatpush.msra.mxu0 0.0
        %696 = vmatpush.msra.mxu0 0.0
        %697 = vmatpush.msra.mxu0 0.0
        %698 = vmatpush.msra.mxu0 0.0
        %699 = vmatpush.msra.mxu0 0.0
        %700 = vmatpush.msra.mxu0 0.0
        %701 = vmatpush.msra.mxu0 0.0
        %v702 = vand.u32 %v318, 4294901760
        %v703 = vsub.f32 %v318, %v702
        %v704 = vand.u32 %v703, 4294901760
        %v705 = vsub.f32 %v703, %v704
        %v706 = vand.u32 %v705, 4294901760
        %707 = vmatpush.msra.mxu0 %v706
        %v708 = vand.u32 %v273, 4294901760
        %v709 = vsub.f32 %v273, %v708
        %v710 = vand.u32 %v709, 4294901760
        %v711 = vsub.f32 %v709, %v710
        %v712 = vand.u32 %v711, 4294901760
        %713 = vmatpush.msra.mxu0 %v712
        %v714 = vand.u32 %v271, 4294901760
        %v715 = vsub.f32 %v271, %v714
        %v716 = vand.u32 %v715, 4294901760
        %v717 = vsub.f32 %v715, %v716
        %v718 = vand.u32 %v717, 4294901760
        %719 = vmatpush.msra.mxu0 %v718
        %v720 = vand.u32 %v269, 4294901760
        %v721 = vsub.f32 %v269, %v720
        %v722 = vand.u32 %v721, 4294901760
        %v723 = vsub.f32 %v721, %v722
        %v724 = vand.u32 %v723, 4294901760
        %725 = vmatpush.msra.mxu0 %v724
        %v726 = vand.u32 %v267, 4294901760
        %v727 = vsub.f32 %v267, %v726
        %v728 = vand.u32 %v727, 4294901760
        %v729 = vsub.f32 %v727, %v728
        %v730 = vand.u32 %v729, 4294901760
        %731 = vmatpush.msra.mxu0 %v730
        %v732 = vand.u32 %v265, 4294901760
        %v733 = vsub.f32 %v265, %v732
        %v734 = vand.u32 %v733, 4294901760
        %v735 = vsub.f32 %v733, %v734
        %v736 = vand.u32 %v735, 4294901760
        %737 = vmatpush.msra.mxu0 %v736
        %v738 = vand.u32 %v263, 4294901760
        %v739 = vsub.f32 %v263, %v738
        %v740 = vand.u32 %v739, 4294901760
        %v741 = vsub.f32 %v739, %v740
        %v742 = vand.u32 %v741, 4294901760
        %743 = vmatpush.msra.mxu0 %v742
        %v744 = vand.u32 %v302, 4294901760
        %745 = vmatmul.f32.gmra.mxu0 %v744
        %v746 = vpop.f32.mrf.mxu0
        %v747 = vadd.f32 %v667, %v746
        %v748 = vand.u32 %v305, 4294901760
        %749 = vmatmul.f32.gmra.mxu0 %v748
        %v750 = vpop.f32.mrf.mxu0
        %v751 = vadd.f32 %v675, %v750
        %v752 = vand.u32 %v308, 4294901760
        %753 = vmatmul.f32.gmra.mxu0 %v752
        %v754 = vpop.f32.mrf.mxu0
        %v755 = vadd.f32 %v683, %v754
        %v756 = vand.u32 %v311, 4294901760
        %757 = vmatmul.f32.gmra.mxu0 %v756
        %v758 = vpop.f32.mrf.mxu0
        %v759 = vadd.f32 %v691, %v758
        %760 = vdwg.mxu0
        %761 = vmatpush.msra.mxu0 0.0
        %762 = vmatpush.msra.mxu0 0.0
        %763 = vmatpush.msra.mxu0 0.0
        %764 = vmatpush.msra.mxu0 0.0
        %765 = vmatpush.msra.mxu0 0.0
        %766 = vmatpush.msra.mxu0 0.0
        %767 = vmatpush.msra.mxu0 0.0
        %768 = vmatpush.msra.mxu0 0.0
        %769 = vmatpush.msra.mxu0 0.0
        %v770 = vand.u32 %v318, 4294901760
        %v771 = vsub.f32 %v318, %v770
        %772 = vmatpush.msra.mxu0 %v771
        %v773 = vand.u32 %v273, 4294901760
        %v774 = vsub.f32 %v273, %v773
        %775 = vmatpush.msra.mxu0 %v774
        %v776 = vand.u32 %v271, 4294901760
        %v777 = vsub.f32 %v271, %v776
        %778 = vmatpush.msra.mxu0 %v777
        %v779 = vand.u32 %v269, 4294901760
        %v780 = vsub.f32 %v269, %v779
        %781 = vmatpush.msra.mxu0 %v780
        %v782 = vand.u32 %v267, 4294901760
        %v783 = vsub.f32 %v267, %v782
        %784 = vmatpush.msra.mxu0 %v783
        %v785 = vand.u32 %v265, 4294901760
        %v786 = vsub.f32 %v265, %v785
        %787 = vmatpush.msra.mxu0 %v786
        %v788 = vand.u32 %v263, 4294901760
        %v789 = vsub.f32 %v263, %v788
        %790 = vmatpush.msra.mxu0 %v789
        %v791 = vand.u32 %v302, 4294901760
        %v792 = vsub.f32 %v302, %v791
        %793 = vmatmul.f32.gmra.mxu0 %v792
        %v794 = vpop.f32.mrf.mxu0
        %v795 = vadd.f32 %v747, %v794
        %v796 = vand.u32 %v305, 4294901760
        %v797 = vsub.f32 %v305, %v796
        %798 = vmatmul.f32.gmra.mxu0 %v797
        %v799 = vpop.f32.mrf.mxu0
        %v800 = vadd.f32 %v751, %v799
        %v801 = vand.u32 %v308, 4294901760
        %v802 = vsub.f32 %v308, %v801
        %803 = vmatmul.f32.gmra.mxu0 %v802
        %v804 = vpop.f32.mrf.mxu0
        %v805 = vadd.f32 %v755, %v804
        %v806 = vand.u32 %v311, 4294901760
        %v807 = vsub.f32 %v311, %v806
        %808 = vmatmul.f32.gmra.mxu0 %v807
        %v809 = vpop.f32.mrf.mxu0
        %v810 = vadd.f32 %v759, %v809
        %811 = vdwg.mxu0
        %812 = vmatpush.msra.mxu0 0.0
        %813 = vmatpush.msra.mxu0 0.0
        %814 = vmatpush.msra.mxu0 0.0
        %815 = vmatpush.msra.mxu0 0.0
        %816 = vmatpush.msra.mxu0 0.0
        %817 = vmatpush.msra.mxu0 0.0
        %818 = vmatpush.msra.mxu0 0.0
        %819 = vmatpush.msra.mxu0 0.0
        %820 = vmatpush.msra.mxu0 0.0
        %v821 = vand.u32 %v318, 4294901760
        %822 = vmatpush.msra.mxu0 %v821
        %v823 = vand.u32 %v273, 4294901760
        %824 = vmatpush.msra.mxu0 %v823
        %v825 = vand.u32 %v271, 4294901760
        %826 = vmatpush.msra.mxu0 %v825
        %v827 = vand.u32 %v269, 4294901760
        %828 = vmatpush.msra.mxu0 %v827
        %v829 = vand.u32 %v267, 4294901760
        %830 = vmatpush.msra.mxu0 %v829
        %v831 = vand.u32 %v265, 4294901760
        %832 = vmatpush.msra.mxu0 %v831
        %v833 = vand.u32 %v263, 4294901760
        %834 = vmatpush.msra.mxu0 %v833
        %v835 = vand.u32 %v302, 4294901760
        %v836 = vsub.f32 %v302, %v835
        %v837 = vand.u32 %v836, 4294901760
        %838 = vmatmul.f32.gmra.mxu0 %v837
        %v839 = vpop.f32.mrf.mxu0
        %v840 = vadd.f32 %v795, %v839
        %v841 = vand.u32 %v305, 4294901760
        %v842 = vsub.f32 %v305, %v841
        %v843 = vand.u32 %v842, 4294901760
        %844 = vmatmul.f32.gmra.mxu0 %v843
        %v845 = vpop.f32.mrf.mxu0
        %v846 = vadd.f32 %v800, %v845
        %v847 = vand.u32 %v308, 4294901760
        %v848 = vsub.f32 %v308, %v847
        %v849 = vand.u32 %v848, 4294901760
        %850 = vmatmul.f32.gmra.mxu0 %v849
        %v851 = vpop.f32.mrf.mxu0
        %v852 = vadd.f32 %v805, %v851
        %v853 = vand.u32 %v311, 4294901760
        %v854 = vsub.f32 %v311, %v853
        %v855 = vand.u32 %v854, 4294901760
        %856 = vmatmul.f32.gmra.mxu0 %v855
        %v857 = vpop.f32.mrf.mxu0
        %v858 = vadd.f32 %v810, %v857
        %859 = vdwg.mxu0
        %860 = vmatpush.msra.mxu0 0.0
        %861 = vmatpush.msra.mxu0 0.0
        %862 = vmatpush.msra.mxu0 0.0
        %863 = vmatpush.msra.mxu0 0.0
        %864 = vmatpush.msra.mxu0 0.0
        %865 = vmatpush.msra.mxu0 0.0
        %866 = vmatpush.msra.mxu0 0.0
        %867 = vmatpush.msra.mxu0 0.0
        %868 = vmatpush.msra.mxu0 0.0
        %v869 = vand.u32 %v318, 4294901760
        %v870 = vsub.f32 %v318, %v869
        %v871 = vand.u32 %v870, 4294901760
        %872 = vmatpush.msra.mxu0 %v871
        %v873 = vand.u32 %v273, 4294901760
        %v874 = vsub.f32 %v273, %v873
        %v875 = vand.u32 %v874, 4294901760
        %876 = vmatpush.msra.mxu0 %v875
        %v877 = vand.u32 %v271, 4294901760
        %v878 = vsub.f32 %v271, %v877
        %v879 = vand.u32 %v878, 4294901760
        %880 = vmatpush.msra.mxu0 %v879
        %v881 = vand.u32 %v269, 4294901760
        %v882 = vsub.f32 %v269, %v881
        %v883 = vand.u32 %v882, 4294901760
        %884 = vmatpush.msra.mxu0 %v883
        %v885 = vand.u32 %v267, 4294901760
        %v886 = vsub.f32 %v267, %v885
        %v887 = vand.u32 %v886, 4294901760
        %888 = vmatpush.msra.mxu0 %v887
        %v889 = vand.u32 %v265, 4294901760
        %v890 = vsub.f32 %v265, %v889
        %v891 = vand.u32 %v890, 4294901760
        %892 = vmatpush.msra.mxu0 %v891
        %v893 = vand.u32 %v263, 4294901760
        %v894 = vsub.f32 %v263, %v893
        %v895 = vand.u32 %v894, 4294901760
        %896 = vmatpush.msra.mxu0 %v895
        %v897 = vand.u32 %v302, 4294901760
        %898 = vmatmul.f32.gmra.mxu0 %v897
        %v899 = vpop.f32.mrf.mxu0
        %v900 = vadd.f32 %v840, %v899
        %v901 = vand.u32 %v305, 4294901760
        %902 = vmatmul.f32.gmra.mxu0 %v901
        %v903 = vpop.f32.mrf.mxu0
        %v904 = vadd.f32 %v846, %v903
        %v905 = vand.u32 %v308, 4294901760
        %906 = vmatmul.f32.gmra.mxu0 %v905
        %v907 = vpop.f32.mrf.mxu0
        %v908 = vadd.f32 %v852, %v907
        %v909 = vand.u32 %v311, 4294901760
        %910 = vmatmul.f32.gmra.mxu0 %v909
        %v911 = vpop.f32.mrf.mxu0
        %v912 = vadd.f32 %v858, %v911
        %913 = vdwg.mxu0
        %914 = vmatpush.msra.mxu0 0.0
        %915 = vmatpush.msra.mxu0 0.0
        %916 = vmatpush.msra.mxu0 0.0
        %917 = vmatpush.msra.mxu0 0.0
        %918 = vmatpush.msra.mxu0 0.0
        %919 = vmatpush.msra.mxu0 0.0
        %920 = vmatpush.msra.mxu0 0.0
        %921 = vmatpush.msra.mxu0 0.0
        %922 = vmatpush.msra.mxu0 0.0
        %v923 = vand.u32 %v318, 4294901760
        %924 = vmatpush.msra.mxu0 %v923
        %v925 = vand.u32 %v273, 4294901760
        %926 = vmatpush.msra.mxu0 %v925
        %v927 = vand.u32 %v271, 4294901760
        %928 = vmatpush.msra.mxu0 %v927
        %v929 = vand.u32 %v269, 4294901760
        %930 = vmatpush.msra.mxu0 %v929
        %v931 = vand.u32 %v267, 4294901760
        %932 = vmatpush.msra.mxu0 %v931
        %v933 = vand.u32 %v265, 4294901760
        %934 = vmatpush.msra.mxu0 %v933
        %v935 = vand.u32 %v263, 4294901760
        %936 = vmatpush.msra.mxu0 %v935
        %v937 = vand.u32 %v302, 4294901760
        %938 = vmatmul.f32.gmra.mxu0 %v937
        %v939 = vpop.f32.mrf.mxu0
        %v940 = vadd.f32 %v900, %v939
        %v941 = vand.u32 %v305, 4294901760
        %942 = vmatmul.f32.gmra.mxu0 %v941
        %v943 = vpop.f32.mrf.mxu0
        %v944 = vadd.f32 %v904, %v943
        %v945 = vand.u32 %v308, 4294901760
        %946 = vmatmul.f32.gmra.mxu0 %v945
        %v947 = vpop.f32.mrf.mxu0
        %v948 = vadd.f32 %v908, %v947
        %v949 = vand.u32 %v311, 4294901760
        %950 = vmatmul.f32.gmra.mxu0 %v949
        %v951 = vpop.f32.mrf.mxu0
        %v952 = vadd.f32 %v912, %v951
        %953 = vdwg.mxu0
        %v954 = vmul.f32 %v623, %v623
        %v955 = vmul.f32 %v940, %v940
        %v956 = vmul.f32 %v627, %v627
        %v957 = vmul.f32 %v944, %v944
        %v958 = vmul.f32 %v631, %v631
        %v959 = vmul.f32 %v948, %v948
        %v960 = vmul.f32 %v635, %v635
        %v961 = vmul.f32 %v952, %v952
        %s962 = scalar_lea.vmem %s229, 48 [#allocation4]
        %v963 = vld [vmem:[%s962] ss:$8 sm:$0x3]
        %s964 = sld [smem:[#allocation2 + $0x3]]
        %v965 = vstv %s964
        %v966 = vadd.f32 %v963, %v965
        %v967 = vmul.f32 %v966, %v966
        %v969 = vperm.slane %v967, 0
        %v970 = vperm.slane %v967, 1
        %vm973 = vcmask 261120
        %v975 = vsel %vm973, 1.0, 0
        %977 = vmatpush.msra.mxu0 0.0
        %978 = vmatpush.msra.mxu0 0.0
        %979 = vmatpush.msra.mxu0 0.0
        %980 = vmatpush.msra.mxu0 0.0
        %981 = vmatpush.msra.mxu0 0.0
        %982 = vmatpush.msra.mxu0 0.0
        %983 = vmatpush.msra.mxu0 0.0
        %984 = vmatpush.msra.mxu0 0.0
        %985 = vmatpush.msra.mxu0 0.0
        %986 = vmatpush.msra.mxu0 0.0
        %987 = vmatpush.msra.mxu0 0.0
        %988 = vmatpush.msra.mxu0 0.0
        %v989 = vand.u32 %v960, 4294901760
        %990 = vmatpush.msra.mxu0 %v989
        %v991 = vand.u32 %v958, 4294901760
        %992 = vmatpush.msra.mxu0 %v991
        %v993 = vand.u32 %v956, 4294901760
        %994 = vmatpush.msra.mxu0 %v993
        %v995 = vand.u32 %v954, 4294901760
        %996 = vmatpush.msra.mxu0 %v995
        %v997 = vand.u32 %v975, 4294901760
        %v998 = vsub.f32 %v975, %v997
        %v999 = vand.u32 %v998, 4294901760
        %v1000 = vsub.f32 %v998, %v999
        %v1001 = vand.u32 %v1000, 4294901760
        %1002 = vmatmul.f32.gmra.mxu0 %v1001
        %v1003 = vpop.f32.mrf.mxu0
        %v1004 = vadd.f32 %v969, %v1003
        %1005 = vdwg.mxu0
        %1006 = vmatpush.msra.mxu0 0.0
        %1007 = vmatpush.msra.mxu0 0.0
        %1008 = vmatpush.msra.mxu0 0.0
        %1009 = vmatpush.msra.mxu0 0.0
        %1010 = vmatpush.msra.mxu0 0.0
        %1011 = vmatpush.msra.mxu0 0.0
        %1012 = vmatpush.msra.mxu0 0.0
        %1013 = vmatpush.msra.mxu0 0.0
        %1014 = vmatpush.msra.mxu0 0.0
        %1015 = vmatpush.msra.mxu0 0.0
        %1016 = vmatpush.msra.mxu0 0.0
        %1017 = vmatpush.msra.mxu0 0.0
        %v1018 = vand.u32 %v960, 4294901760
        %v1019 = vsub.f32 %v960, %v1018
        %v1020 = vand.u32 %v1019, 4294901760
        %v1021 = vsub.f32 %v1019, %v1020
        %v1022 = vand.u32 %v1021, 4294901760
        %1023 = vmatpush.msra.mxu0 %v1022
        %v1024 = vand.u32 %v958, 4294901760
        %v1025 = vsub.f32 %v958, %v1024
        %v1026 = vand.u32 %v1025, 4294901760
        %v1027 = vsub.f32 %v1025, %v1026
        %v1028 = vand.u32 %v1027, 4294901760
        %1029 = vmatpush.msra.mxu0 %v1028
        %v1030 = vand.u32 %v956, 4294901760
        %v1031 = vsub.f32 %v956, %v1030
        %v1032 = vand.u32 %v1031, 4294901760
        %v1033 = vsub.f32 %v1031, %v1032
        %v1034 = vand.u32 %v1033, 4294901760
        %1035 = vmatpush.msra.mxu0 %v1034
        %v1036 = vand.u32 %v954, 4294901760
        %v1037 = vsub.f32 %v954, %v1036
        %v1038 = vand.u32 %v1037, 4294901760
        %v1039 = vsub.f32 %v1037, %v1038
        %v1040 = vand.u32 %v1039, 4294901760
        %1041 = vmatpush.msra.mxu0 %v1040
        %v1042 = vand.u32 %v975, 4294901760
        %1043 = vmatmul.f32.gmra.mxu0 %v1042
        %v1044 = vpop.f32.mrf.mxu0
        %v1045 = vadd.f32 %v1004, %v1044
        %1046 = vdwg.mxu0
        %1047 = vmatpush.msra.mxu0 0.0
        %1048 = vmatpush.msra.mxu0 0.0
        %1049 = vmatpush.msra.mxu0 0.0
        %1050 = vmatpush.msra.mxu0 0.0
        %1051 = vmatpush.msra.mxu0 0.0
        %1052 = vmatpush.msra.mxu0 0.0
        %1053 = vmatpush.msra.mxu0 0.0
        %1054 = vmatpush.msra.mxu0 0.0
        %1055 = vmatpush.msra.mxu0 0.0
        %1056 = vmatpush.msra.mxu0 0.0
        %1057 = vmatpush.msra.mxu0 0.0
        %1058 = vmatpush.msra.mxu0 0.0
        %v1059 = vand.u32 %v960, 4294901760
        %v1060 = vsub.f32 %v960, %v1059
        %1061 = vmatpush.msra.mxu0 %v1060
        %v1062 = vand.u32 %v958, 4294901760
        %v1063 = vsub.f32 %v958, %v1062
        %1064 = vmatpush.msra.mxu0 %v1063
        %v1065 = vand.u32 %v956, 4294901760
        %v1066 = vsub.f32 %v956, %v1065
        %1067 = vmatpush.msra.mxu0 %v1066
        %v1068 = vand.u32 %v954, 4294901760
        %v1069 = vsub.f32 %v954, %v1068
        %1070 = vmatpush.msra.mxu0 %v1069
        %v1071 = vand.u32 %v975, 4294901760
        %v1072 = vsub.f32 %v975, %v1071
        %1073 = vmatmul.f32.gmra.mxu0 %v1072
        %v1074 = vpop.f32.mrf.mxu0
        %v1075 = vadd.f32 %v1045, %v1074
        %1076 = vdwg.mxu0
        %1077 = vmatpush.msra.mxu0 0.0
        %1078 = vmatpush.msra.mxu0 0.0
        %1079 = vmatpush.msra.mxu0 0.0
        %1080 = vmatpush.msra.mxu0 0.0
        %1081 = vmatpush.msra.mxu0 0.0
        %1082 = vmatpush.msra.mxu0 0.0
        %1083 = vmatpush.msra.mxu0 0.0
        %1084 = vmatpush.msra.mxu0 0.0
        %1085 = vmatpush.msra.mxu0 0.0
        %1086 = vmatpush.msra.mxu0 0.0
        %1087 = vmatpush.msra.mxu0 0.0
        %1088 = vmatpush.msra.mxu0 0.0
        %v1089 = vand.u32 %v960, 4294901760
        %1090 = vmatpush.msra.mxu0 %v1089
        %v1091 = vand.u32 %v958, 4294901760
        %1092 = vmatpush.msra.mxu0 %v1091
        %v1093 = vand.u32 %v956, 4294901760
        %1094 = vmatpush.msra.mxu0 %v1093
        %v1095 = vand.u32 %v954, 4294901760
        %1096 = vmatpush.msra.mxu0 %v1095
        %v1097 = vand.u32 %v975, 4294901760
        %v1098 = vsub.f32 %v975, %v1097
        %v1099 = vand.u32 %v1098, 4294901760
        %1100 = vmatmul.f32.gmra.mxu0 %v1099
        %v1101 = vpop.f32.mrf.mxu0
        %v1102 = vadd.f32 %v1075, %v1101
        %1103 = vdwg.mxu0
        %1104 = vmatpush.msra.mxu0 0.0
        %1105 = vmatpush.msra.mxu0 0.0
        %1106 = vmatpush.msra.mxu0 0.0
        %1107 = vmatpush.msra.mxu0 0.0
        %1108 = vmatpush.msra.mxu0 0.0
        %1109 = vmatpush.msra.mxu0 0.0
        %1110 = vmatpush.msra.mxu0 0.0
        %1111 = vmatpush.msra.mxu0 0.0
        %1112 = vmatpush.msra.mxu0 0.0
        %1113 = vmatpush.msra.mxu0 0.0
        %1114 = vmatpush.msra.mxu0 0.0
        %1115 = vmatpush.msra.mxu0 0.0
        %v1116 = vand.u32 %v960, 4294901760
        %v1117 = vsub.f32 %v960, %v1116
        %v1118 = vand.u32 %v1117, 4294901760
        %1119 = vmatpush.msra.mxu0 %v1118
        %v1120 = vand.u32 %v958, 4294901760
        %v1121 = vsub.f32 %v958, %v1120
        %v1122 = vand.u32 %v1121, 4294901760
        %1123 = vmatpush.msra.mxu0 %v1122
        %v1124 = vand.u32 %v956, 4294901760
        %v1125 = vsub.f32 %v956, %v1124
        %v1126 = vand.u32 %v1125, 4294901760
        %1127 = vmatpush.msra.mxu0 %v1126
        %v1128 = vand.u32 %v954, 4294901760
        %v1129 = vsub.f32 %v954, %v1128
        %v1130 = vand.u32 %v1129, 4294901760
        %1131 = vmatpush.msra.mxu0 %v1130
        %v1132 = vand.u32 %v975, 4294901760
        %1133 = vmatmul.f32.gmra.mxu0 %v1132
        %v1134 = vpop.f32.mrf.mxu0
        %v1135 = vadd.f32 %v1102, %v1134
        %1136 = vdwg.mxu0
        %1137 = vmatpush.msra.mxu0 0.0
        %1138 = vmatpush.msra.mxu0 0.0
        %1139 = vmatpush.msra.mxu0 0.0
        %1140 = vmatpush.msra.mxu0 0.0
        %1141 = vmatpush.msra.mxu0 0.0
        %1142 = vmatpush.msra.mxu0 0.0
        %1143 = vmatpush.msra.mxu0 0.0
        %1144 = vmatpush.msra.mxu0 0.0
        %1145 = vmatpush.msra.mxu0 0.0
        %1146 = vmatpush.msra.mxu0 0.0
        %1147 = vmatpush.msra.mxu0 0.0
        %1148 = vmatpush.msra.mxu0 0.0
        %v1149 = vand.u32 %v960, 4294901760
        %1150 = vmatpush.msra.mxu0 %v1149
        %v1151 = vand.u32 %v958, 4294901760
        %1152 = vmatpush.msra.mxu0 %v1151
        %v1153 = vand.u32 %v956, 4294901760
        %1154 = vmatpush.msra.mxu0 %v1153
        %v1155 = vand.u32 %v954, 4294901760
        %1156 = vmatpush.msra.mxu0 %v1155
        %v1157 = vand.u32 %v975, 4294901760
        %1158 = vmatmul.f32.gmra.mxu0 %v1157
        %v1159 = vpop.f32.mrf.mxu0
        %v1160 = vadd.f32 %v1135, %v1159
        %1161 = vdwg.mxu0
        %1162 = vmatpush.msra.mxu0 0.0
        %1163 = vmatpush.msra.mxu0 0.0
        %1164 = vmatpush.msra.mxu0 0.0
        %1165 = vmatpush.msra.mxu0 0.0
        %1166 = vmatpush.msra.mxu0 0.0
        %1167 = vmatpush.msra.mxu0 0.0
        %1168 = vmatpush.msra.mxu0 0.0
        %1169 = vmatpush.msra.mxu0 0.0
        %1170 = vmatpush.msra.mxu0 0.0
        %1171 = vmatpush.msra.mxu0 0.0
        %1172 = vmatpush.msra.mxu0 0.0
        %1173 = vmatpush.msra.mxu0 0.0
        %v1174 = vand.u32 %v961, 4294901760
        %1175 = vmatpush.msra.mxu0 %v1174
        %v1176 = vand.u32 %v959, 4294901760
        %1177 = vmatpush.msra.mxu0 %v1176
        %v1178 = vand.u32 %v957, 4294901760
        %1179 = vmatpush.msra.mxu0 %v1178
        %v1180 = vand.u32 %v955, 4294901760
        %1181 = vmatpush.msra.mxu0 %v1180
        %v1182 = vand.u32 %v975, 4294901760
        %v1183 = vsub.f32 %v975, %v1182
        %v1184 = vand.u32 %v1183, 4294901760
        %v1185 = vsub.f32 %v1183, %v1184
        %v1186 = vand.u32 %v1185, 4294901760
        %1187 = vmatmul.f32.gmra.mxu0 %v1186
        %v1188 = vpop.f32.mrf.mxu0
        %v1189 = vadd.f32 %v970, %v1188
        %1190 = vdwg.mxu0
        %1191 = vmatpush.msra.mxu0 0.0
        %1192 = vmatpush.msra.mxu0 0.0
        %1193 = vmatpush.msra.mxu0 0.0
        %1194 = vmatpush.msra.mxu0 0.0
        %1195 = vmatpush.msra.mxu0 0.0
        %1196 = vmatpush.msra.mxu0 0.0
        %1197 = vmatpush.msra.mxu0 0.0
        %1198 = vmatpush.msra.mxu0 0.0
        %1199 = vmatpush.msra.mxu0 0.0
        %1200 = vmatpush.msra.mxu0 0.0
        %1201 = vmatpush.msra.mxu0 0.0
        %1202 = vmatpush.msra.mxu0 0.0
        %v1203 = vand.u32 %v961, 4294901760
        %v1204 = vsub.f32 %v961, %v1203
        %v1205 = vand.u32 %v1204, 4294901760
        %v1206 = vsub.f32 %v1204, %v1205
        %v1207 = vand.u32 %v1206, 4294901760
        %1208 = vmatpush.msra.mxu0 %v1207
        %v1209 = vand.u32 %v959, 4294901760
        %v1210 = vsub.f32 %v959, %v1209
        %v1211 = vand.u32 %v1210, 4294901760
        %v1212 = vsub.f32 %v1210, %v1211
        %v1213 = vand.u32 %v1212, 4294901760
        %1214 = vmatpush.msra.mxu0 %v1213
        %v1215 = vand.u32 %v957, 4294901760
        %v1216 = vsub.f32 %v957, %v1215
        %v1217 = vand.u32 %v1216, 4294901760
        %v1218 = vsub.f32 %v1216, %v1217
        %v1219 = vand.u32 %v1218, 4294901760
        %1220 = vmatpush.msra.mxu0 %v1219
        %v1221 = vand.u32 %v955, 4294901760
        %v1222 = vsub.f32 %v955, %v1221
        %v1223 = vand.u32 %v1222, 4294901760
        %v1224 = vsub.f32 %v1222, %v1223
        %v1225 = vand.u32 %v1224, 4294901760
        %1226 = vmatpush.msra.mxu0 %v1225
        %v1227 = vand.u32 %v975, 4294901760
        %1228 = vmatmul.f32.gmra.mxu0 %v1227
        %v1229 = vpop.f32.mrf.mxu0
        %v1230 = vadd.f32 %v1189, %v1229
        %1231 = vdwg.mxu0
        %1232 = vmatpush.msra.mxu0 0.0
        %1233 = vmatpush.msra.mxu0 0.0
        %1234 = vmatpush.msra.mxu0 0.0
        %1235 = vmatpush.msra.mxu0 0.0
        %1236 = vmatpush.msra.mxu0 0.0
        %1237 = vmatpush.msra.mxu0 0.0
        %1238 = vmatpush.msra.mxu0 0.0
        %1239 = vmatpush.msra.mxu0 0.0
        %1240 = vmatpush.msra.mxu0 0.0
        %1241 = vmatpush.msra.mxu0 0.0
        %1242 = vmatpush.msra.mxu0 0.0
        %1243 = vmatpush.msra.mxu0 0.0
        %v1244 = vand.u32 %v961, 4294901760
        %v1245 = vsub.f32 %v961, %v1244
        %1246 = vmatpush.msra.mxu0 %v1245
        %v1247 = vand.u32 %v959, 4294901760
        %v1248 = vsub.f32 %v959, %v1247
        %1249 = vmatpush.msra.mxu0 %v1248
        %v1250 = vand.u32 %v957, 4294901760
        %v1251 = vsub.f32 %v957, %v1250
        %1252 = vmatpush.msra.mxu0 %v1251
        %v1253 = vand.u32 %v955, 4294901760
        %v1254 = vsub.f32 %v955, %v1253
        %1255 = vmatpush.msra.mxu0 %v1254
        %v1256 = vand.u32 %v975, 4294901760
        %v1257 = vsub.f32 %v975, %v1256
        %1258 = vmatmul.f32.gmra.mxu0 %v1257
        %v1259 = vpop.f32.mrf.mxu0
        %v1260 = vadd.f32 %v1230, %v1259
        %1261 = vdwg.mxu0
        %1262 = vmatpush.msra.mxu0 0.0
        %1263 = vmatpush.msra.mxu0 0.0
        %1264 = vmatpush.msra.mxu0 0.0
        %1265 = vmatpush.msra.mxu0 0.0
        %1266 = vmatpush.msra.mxu0 0.0
        %1267 = vmatpush.msra.mxu0 0.0
        %1268 = vmatpush.msra.mxu0 0.0
        %1269 = vmatpush.msra.mxu0 0.0
        %1270 = vmatpush.msra.mxu0 0.0
        %1271 = vmatpush.msra.mxu0 0.0
        %1272 = vmatpush.msra.mxu0 0.0
        %1273 = vmatpush.msra.mxu0 0.0
        %v1274 = vand.u32 %v961, 4294901760
        %1275 = vmatpush.msra.mxu0 %v1274
        %v1276 = vand.u32 %v959, 4294901760
        %1277 = vmatpush.msra.mxu0 %v1276
        %v1278 = vand.u32 %v957, 4294901760
        %1279 = vmatpush.msra.mxu0 %v1278
        %v1280 = vand.u32 %v955, 4294901760
        %1281 = vmatpush.msra.mxu0 %v1280
        %v1282 = vand.u32 %v975, 4294901760
        %v1283 = vsub.f32 %v975, %v1282
        %v1284 = vand.u32 %v1283, 4294901760
        %1285 = vmatmul.f32.gmra.mxu0 %v1284
        %v1286 = vpop.f32.mrf.mxu0
        %v1287 = vadd.f32 %v1260, %v1286
        %1288 = vdwg.mxu0
        %1289 = vmatpush.msra.mxu0 0.0
        %1290 = vmatpush.msra.mxu0 0.0
        %1291 = vmatpush.msra.mxu0 0.0
        %1292 = vmatpush.msra.mxu0 0.0
        %1293 = vmatpush.msra.mxu0 0.0
        %1294 = vmatpush.msra.mxu0 0.0
        %1295 = vmatpush.msra.mxu0 0.0
        %1296 = vmatpush.msra.mxu0 0.0
        %1297 = vmatpush.msra.mxu0 0.0
        %1298 = vmatpush.msra.mxu0 0.0
        %1299 = vmatpush.msra.mxu0 0.0
        %1300 = vmatpush.msra.mxu0 0.0
        %v1301 = vand.u32 %v961, 4294901760
        %v1302 = vsub.f32 %v961, %v1301
        %v1303 = vand.u32 %v1302, 4294901760
        %1304 = vmatpush.msra.mxu0 %v1303
        %v1305 = vand.u32 %v959, 4294901760
        %v1306 = vsub.f32 %v959, %v1305
        %v1307 = vand.u32 %v1306, 4294901760
        %1308 = vmatpush.msra.mxu0 %v1307
        %v1309 = vand.u32 %v957, 4294901760
        %v1310 = vsub.f32 %v957, %v1309
        %v1311 = vand.u32 %v1310, 4294901760
        %1312 = vmatpush.msra.mxu0 %v1311
        %v1313 = vand.u32 %v955, 4294901760
        %v1314 = vsub.f32 %v955, %v1313
        %v1315 = vand.u32 %v1314, 4294901760
        %1316 = vmatpush.msra.mxu0 %v1315
        %v1317 = vand.u32 %v975, 4294901760
        %1318 = vmatmul.f32.gmra.mxu0 %v1317
        %v1319 = vpop.f32.mrf.mxu0
        %v1320 = vadd.f32 %v1287, %v1319
        %1321 = vdwg.mxu0
        %1322 = vmatpush.msra.mxu0 0.0
        %1323 = vmatpush.msra.mxu0 0.0
        %1324 = vmatpush.msra.mxu0 0.0
        %1325 = vmatpush.msra.mxu0 0.0
        %1326 = vmatpush.msra.mxu0 0.0
        %1327 = vmatpush.msra.mxu0 0.0
        %1328 = vmatpush.msra.mxu0 0.0
        %1329 = vmatpush.msra.mxu0 0.0
        %1330 = vmatpush.msra.mxu0 0.0
        %1331 = vmatpush.msra.mxu0 0.0
        %1332 = vmatpush.msra.mxu0 0.0
        %1333 = vmatpush.msra.mxu0 0.0
        %v1334 = vand.u32 %v961, 4294901760
        %1335 = vmatpush.msra.mxu0 %v1334
        %v1336 = vand.u32 %v959, 4294901760
        %1337 = vmatpush.msra.mxu0 %v1336
        %v1338 = vand.u32 %v957, 4294901760
        %1339 = vmatpush.msra.mxu0 %v1338
        %v1340 = vand.u32 %v955, 4294901760
        %1341 = vmatpush.msra.mxu0 %v1340
        %v1342 = vand.u32 %v975, 4294901760
        %1343 = vmatmul.f32.gmra.mxu0 %v1342
        %v1344 = vpop.f32.mrf.mxu0
        %v1345 = vadd.f32 %v1320, %v1344
        %1346 = vdwg.mxu0
        %s1347 = sld [smem:[#allocation2]]
        %v1348 = vstv %s1347
        %v1349 = vmul.f32 %v1160, %v1348
        %v1350 = vmul.f32 %v1345, %v1348
        %v1351 = vmul.f32 %v1349, 1.442695
        %v1352 = vpow.pop %v1351
        %v1353 = vmul.f32 %v1350, 1.442695
        %v1354 = vpow.pop %v1353
        %s1355 = sld [smem:[#allocation2 + $0x1]]
        %v1356 = vstv %s1355
        %v1357 = vmul.f32 %v1352, %v1356
        %v1358 = vmul.f32 %v1354, %v1356
        %s1359 = sld [smem:[#allocation2 + $0x2]]
        %v1360 = vstv %s1359
        %v1361 = vadd.f32 %v1357, %v1360
        %v1362 = vadd.f32 %v1358, %v1360
        %v1363 = vxor.u32 %v1361, 2147483648
        %v1364 = vxor.u32 %v1362, 2147483648
        %v1365 = vmul.f32 %v1363, 1.442695
        %v1366 = vpow.pop %v1365
        %v1367 = vmul.f32 %v1364, 1.442695
        %v1368 = vpow.pop %v1367
        %v1369 = vadd.f32 %v1366, 1.0
        %v1370 = vadd.f32 %v1368, 1.0
        %v1371 = vrcp.pop %v1369
        %v1372 = vmul.f32 %v1369, %v1371
        %v1373 = vsub.f32 1.0, %v1372
        %v1374 = vmul.f32 %v1371, %v1373
        %v1375 = vadd.f32 %v1371, %v1374
        %vm1376 = vweird.f32 %v1369
        %vm1377 = vweird.f32 %v1371
        %vm1378 = vmor %vm1376, %vm1377
        %v1379 = vsel %vm1378, %v1371, %v1375
        %v1380 = vand.u32 2147483647, %v1369
        %vm1381 = vcmp.eq.f32.partialorder %v1380, 8.507059e+37
        %v1382 = vand.u32 %v1369, 2147483648
        %v1383 = vor.u32 1.1754944e-38, %v1382
        %v1384 = vsel %vm1381, %v1383, %v1379
        %v1385 = vmul.f32 1.0, %v1384
        %v1386 = vrcp.pop %v1370
        %v1387 = vmul.f32 %v1370, %v1386
        %v1388 = vsub.f32 1.0, %v1387
        %v1389 = vmul.f32 %v1386, %v1388
        %v1390 = vadd.f32 %v1386, %v1389
        %vm1391 = vweird.f32 %v1370
        %vm1392 = vweird.f32 %v1386
        %vm1393 = vmor %vm1391, %vm1392
        %v1394 = vsel %vm1393, %v1386, %v1390
        %v1395 = vand.u32 2147483647, %v1370
        %vm1396 = vcmp.eq.f32.partialorder %v1395, 8.507059e+37
        %v1397 = vand.u32 %v1370, 2147483648
        %v1398 = vor.u32 1.1754944e-38, %v1397
        %v1399 = vsel %vm1396, %v1398, %v1394
        %v1400 = vmul.f32 1.0, %v1399
        %v1403 = vrot.slane %v1400, 7
        %v1404 = vsel %vm313, %v1385, %v1403
        %v1406 = vlaneseq
        %vm1407 = vcmp.ge.s32.totalorder %v1406, 0
        %vm1408 = vcmp.lt.s32.totalorder %v1406, 256
        %vm1409 = vmand %vm1407, %vm1408
        %1410 = vst.msk [vmem:[%s256] sm:$0x3] %vm1409, %v1404
        %s1411 = smul.u32 2, %s16
        %p1412 = scmp.lt.s32.totalorder %s1411, 3
        %s1413 = scalar_select %p1412, %s1411, 3
        %s1414 = scalar_lea.vmem %s4, %s1413
        // Predicated region
        $region64: #{conv_svm_forward.1} parent=54 // pred_check
          %p1415 = pneg %p123
        $region65: #{conv_svm_forward.1} parent=54 // pred_check_branch
          %1417 = sbr.rel (%p1415) target = $region67
        $region66: #{conv_svm_forward.1} parent=54 // pred_region
          %s1418 = smul.u32 2, %s16
        $region67: #{conv_svm_forward.1} parent=54 // pred_fallthru
          _
      $region55: #{conv_svm_forward.1} parent=5 // pred_fallthru
        _
      %p1419 = scmp.le.s32.totalorder 2, %s11
      // Predicated region
      $region68: #{conv_svm_forward.1} parent=5 // pred_check
        %p1420 = pneg %p1419
      $region69: #{conv_svm_forward.1} parent=5 // pred_check_branch
        %1422 = sbr.rel (%p1420) target = $region71
      $region70: #{conv_svm_forward.1} parent=5 // pred_region
        %s1423 = ssub.s32 %s11, 2
        // Predicated region
        $region72: #{conv_svm_forward.1} parent=70 // pred_check
          %p1424 = pneg %p129
        $region73: #{conv_svm_forward.1} parent=70 // pred_check_branch
          %1426 = sbr.rel (%p1424) target = $region75
        $region74: #{conv_svm_forward.1} parent=70 // pred_region
          %s1427 = smul.u32 2, %s17
          %p1428 = scmp.lt.s32.totalorder %s1427, 3
          %s1429 = scalar_select %p1428, %s1427, 3
          %s1430 = scalar_lea.vmem %s4, %s1429
        $region75: #{conv_svm_forward.1} parent=70 // pred_fallthru
          _
      $region71: #{conv_svm_forward.1} parent=5 // pred_fallthru
        _
    $region6: #{conv_svm_forward.1} parent=1 // loop_footer
      %s15 = sadd.s32 1, %s11
    $region7: #{conv_svm_forward.1} parent=1 // loop_footer_branch
      %10 = sbr.rel target = $region3
    $region8: #{conv_svm_forward.1} parent=1 // loop_exit
      _
    %1431 = vsyncpa [#allocation3], 1
    %s1432 = scalar_lea.sflag [#allocation3], 1
    %1433 = vsyncpa %s1432, 1

</llo_original>
